<compile_context>
chip_gen: v5e
topology: v5e:2x2
jax: 0.10.0
libtpu: 0.0.40
codegen_flags: <defaults>
</compile_context>

<pallas_src>
import functools

import jax
import jax.numpy as jnp
from jax import lax
from jax.experimental import pallas as pl
from jax.experimental.pallas import tpu as pltpu


# ----------------------------------------------------------------------------- kernel
def _composition_kernel(x_ref, temb_ref, cond_ref,
                        w1t_ref, w2t_ref, b2_ref,
                        wf_ref, wcls_ref, bcls_ref,
                        out_ref, *, y3_idx, grad_scale):
    # TODO(synk): y3_idx / grad_scale are compile-time constants; move to SMEM scalar
    # prefetch if they need to vary at runtime without recompiling.
    x = x_ref[0]          # [C, HW]   channels on sublanes, pixels on lanes
    temb = temb_ref[0]    # [HD, 1]   (b1 + score-model time embedding, pre-folded)
    cond = cond_ref[0]    # [1, F]    classifier (t, y1, y2) conditioning

    # ---- binary_diffusion score: per-pixel MLP  (W1^T x -> SiLU -> W2^T h) ----
    h_pre = (jnp.dot(w1t_ref[...], x, preferred_element_type=jnp.float32)
             + temb)                                                 # [HD, HW]
    h = h_pre * jax.nn.sigmoid(h_pre)                                # SiLU (f32, VPU/EUP)
    score = (jnp.dot(w2t_ref[...], h, preferred_element_type=jnp.float32)
             + b2_ref[...])                                          # [C, HW]

    # ---- conditional_classifier forward (mean-pool linearity: mean(x@wf)=mean(x)@wf) ----
    xbar = jnp.mean(x, axis=1, keepdims=True)                        # [C, 1]  lane reduce
    pooled = jnp.sum(xbar * wf_ref[...], axis=0, keepdims=True)      # [1, F]  VPU + sublane reduce
    pre = pooled + cond                                              # [1, F]
    sig = jax.nn.sigmoid(pre)
    g = pre * sig                                                    # SiLU
    logits = (jnp.dot(g, wcls_ref[...], preferred_element_type=jnp.float32)
              + bcls_ref[...])                                       # [1, M]

    # ---- analytic grad of log_softmax(logits)[y3-1] w.r.t. x ----
    # (replaces torch's backward(gradient=one_hot(y3-1)))
    mmax = jnp.max(logits, axis=-1, keepdims=True)
    e = jnp.exp(logits - mmax)
    inv_denom = pl.reciprocal(jnp.sum(e, axis=-1, keepdims=True), approx=True)
    sm = e * inv_denom                                               # softmax [1, M]
    onehot = (lax.broadcasted_iota(jnp.int32, logits.shape, 1) == y3_idx
              ).astype(jnp.float32)
    grad_logits = onehot - sm                                        # [1, M]
    # grad wrt g:  grad_logits @ Wcls^T
    grad_g = lax.dot_general(grad_logits, wcls_ref[...],
                             (((1,), (1,)), ((), ())),
                             preferred_element_type=jnp.float32)     # [1, F]
    dsilu = sig * (1.0 + pre * (1.0 - sig))                          # SiLU'
    grad_pre = grad_g * dsilu                                        # [1, F]
    # grad wrt x: constant over pixels (mean pool) => one [C, 1] column.
    # (guidance_scale / HW is folded into grad_scale at trace time)
    grad_col = jnp.sum(wf_ref[...] * grad_pre, axis=1, keepdims=True)  # [C, 1]

    out_ref[0] = score + grad_scale * grad_col                       # broadcast over HW lanes


# ----------------------------------------------------------------------------- wrapper
def make_params(key, C, HD, F, M, E=8):
    ks = jax.random.split(key, 8)
    s = 0.2
    return dict(
        w1=jax.random.normal(ks[0], (C, HD), jnp.float32) * s,
        b1=jnp.zeros((1, HD), jnp.float32),
        w2=jax.random.normal(ks[1], (HD, C), jnp.float32) * s,
        b2=jnp.zeros((1, C), jnp.float32),
        wf=jax.random.normal(ks[2], (C, F), jnp.float32) * s,
        wcls=jax.random.normal(ks[3], (F, M), jnp.float32) * s,
        bcls=jnp.zeros((1, M), jnp.float32),
        wt_s=jax.random.normal(ks[4], (E, HD), jnp.float32) * s,
        wt_c=jax.random.normal(ks[5], (E, F), jnp.float32) * s,
        ey1=jax.random.normal(ks[6], (M, F), jnp.float32) * s,
        ey2=jax.random.normal(ks[7], (M, F), jnp.float32) * s,
    )


def _time_features(t, E):
    half = E // 2
    freqs = jnp.exp(-jnp.log(10000.0) * jnp.arange(half, dtype=jnp.float32) / half)
    return jnp.concatenate([jnp.sin(t[:, None] * freqs),
                            jnp.cos(t[:, None] * freqs)], axis=-1)   # [B, E]


def conditional_diffusion_composition(x_nchw, t, params, *, y1, y2, y3, guidance_scale):
    B, C, H, W = x_nchw.shape
    HW = H * W
    x = x_nchw.reshape(B, C, HW)                                     # NCHW -> [B, C, HW] (free)

    # tiny glue: time / class conditioning embeddings
    tf = _time_features(t, params["wt_s"].shape[0])
    # fold b1 into the per-batch score-model time embedding; column layout [B, HD, 1]
    temb_b1 = (jax.nn.silu(tf @ params["wt_s"]) + params["b1"][0])[:, :, None]
    cond_c = (tf @ params["wt_c"]
              + params["ey1"][y1] + params["ey2"][y2])[:, None, :]   # [B, 1, F]

    HD = params["w1"].shape[1]
    F = params["wf"].shape[1]
    M = params["wcls"].shape[1]

    w1t = params["w1"].T                                             # [HD, C]
    w2t = params["w2"].T                                             # [C, HD]
    b2c = params["b2"].reshape(C, 1)                                 # [C, 1]

    kernel = functools.partial(
        _composition_kernel, y3_idx=y3 - 1,
        grad_scale=float(guidance_scale) / float(HW))                # 1/HW folded in

    def full(shape):
        zeros = (0,) * len(shape)
        return pl.BlockSpec(shape, lambda b, _z=zeros: _z)

    out = pl.pallas_call(
        kernel,
        out_shape=jax.ShapeDtypeStruct((B, C, HW), jnp.float32),
        grid_spec=pltpu.PrefetchScalarGridSpec(
            num_scalar_prefetch=0,
            grid=(B,),                                               # one batch per TC on v7x
            in_specs=[
                pl.BlockSpec((1, C, HW), lambda b: (b, 0, 0)),       # x
                pl.BlockSpec((1, HD, 1), lambda b: (b, 0, 0)),       # temb_b1 (= b1 + temb)
                pl.BlockSpec((1, 1, F), lambda b: (b, 0, 0)),        # cond_c
                full((HD, C)),                                       # w1t
                full((C, HD)), full((C, 1)),                         # w2t, b2 (column)
                full((C, F)),                                        # wf
                full((F, M)), full((1, M)),                          # wcls, bcls
            ],
            out_specs=pl.BlockSpec((1, C, HW), lambda b: (b, 0, 0)), # lane-dense (HW=256)
        ),
        compiler_params=pltpu.CompilerParams(dimension_semantics=("parallel",)),
    )(x, temb_b1, cond_c, w1t, w2t, b2c,
      params["wf"], params["wcls"], params["bcls"])

    return out.reshape(B, C, H, W)                                   # back to NCHW (free)


# ----------------------------------------------------------------------------- pure-JAX reference
def reference(x_nchw, t, params, *, y1, y2, y3, guidance_scale):
    B, C, H, W = x_nchw.shape
    HW = H * W
    x = jnp.transpose(x_nchw, (0, 2, 3, 1)).reshape(B, HW, C)
    tf = _time_features(t, params["wt_s"].shape[0])
    temb_s = jax.nn.silu(tf @ params["wt_s"])
    cond_c = tf @ params["wt_c"] + params["ey1"][y1] + params["ey2"][y2]

    h = jax.nn.silu(x @ params["w1"] + params["b1"][0] + temb_s[:, None, :])
    score = h @ params["w2"] + params["b2"][0]

    def logprob_y3(xb, condb):
        pooled = jnp.mean(xb @ params["wf"], axis=0)
        g = jax.nn.silu(pooled + condb)
        logits = g @ params["wcls"] + params["bcls"][0]
        return jax.nn.log_softmax(logits)[y3 - 1]

    cls_grad = jax.vmap(jax.grad(logprob_y3))(x, cond_c)             # autograd, like torch backward
    out = score + guidance_scale * cls_grad
    return jnp.transpose(out.reshape(B, H, W, C), (0, 3, 1, 2))


# ----------------------------------------------------------------------------- main
if __name__ == "__main__":
    B, C, H, W = 2, 4, 16, 16
    HD, F, M = 32, 32, 6
    Y1, Y2, Y3 = 1, 2, 3
    GUIDANCE = 1.5

    key = jax.random.PRNGKey(0)
    k_param, k_x, k_t = jax.random.split(key, 3)
    params = make_params(k_param, C, HD, F, M)

    x = jax.random.normal(k_x, (B, C, H, W), jnp.float32)            # NCHW, like torch
    t = jax.random.uniform(k_t, (B,), jnp.float32)

    out = conditional_diffusion_composition(x, t, params, y1=Y1, y2=Y2, y3=Y3,
                                            guidance_scale=GUIDANCE)
    out = jax.block_until_ready(out)

    ref = reference(x, t, params, y1=Y1, y2=Y2, y3=Y3, guidance_scale=GUIDANCE)
    assert out.shape == (B, C, H, W) and out.dtype == jnp.float32
    assert jnp.allclose(out, ref, atol=1e-4, rtol=1e-4), "mismatch vs pure-JAX reference"

    print("KERNEL_OK")
</pallas_src>

<mosaic_0001>
module attributes {stable_mosaic.version = 11 : i64} {
  func.func @_composition_kernel(%arg0: i32, %arg1: memref<1x4x256xf32, #tpu.memory_space<vmem>>, %arg2: memref<1x32x1xf32, #tpu.memory_space<vmem>>, %arg3: memref<1x1x32xf32, #tpu.memory_space<vmem>>, %arg4: memref<32x4xf32, #tpu.memory_space<vmem>>, %arg5: memref<4x32xf32, #tpu.memory_space<vmem>>, %arg6: memref<4x1xf32, #tpu.memory_space<vmem>>, %arg7: memref<4x32xf32, #tpu.memory_space<vmem>>, %arg8: memref<32x6xf32, #tpu.memory_space<vmem>>, %arg9: memref<1x6xf32, #tpu.memory_space<vmem>>, %arg10: memref<1x4x256xf32, #tpu.memory_space<vmem>>) attributes {dimension_semantics = [#tpu.dimension_semantics<parallel>], iteration_bounds = array<i64: 2>, scalar_prefetch = 0 : i64, scratch_operands = 0 : i64, tpu.core_type = #tpu.core_type<tc>, window_params = [{transform_indices = @transform_0, window_bounds = array<i64: 1, 4, 256>}, {transform_indices = @transform_1, window_bounds = array<i64: 1, 32, 1>}, {transform_indices = @transform_2, window_bounds = array<i64: 1, 1, 32>}, {pipeline_mode = #tpu.pipeline_mode<synchronous>, transform_indices = @transform_3, window_bounds = array<i64: 32, 4>}, {pipeline_mode = #tpu.pipeline_mode<synchronous>, transform_indices = @transform_4, window_bounds = array<i64: 4, 32>}, {pipeline_mode = #tpu.pipeline_mode<synchronous>, transform_indices = @transform_5, window_bounds = array<i64: 4, 1>}, {pipeline_mode = #tpu.pipeline_mode<synchronous>, transform_indices = @transform_6, window_bounds = array<i64: 4, 32>}, {pipeline_mode = #tpu.pipeline_mode<synchronous>, transform_indices = @transform_7, window_bounds = array<i64: 32, 6>}, {pipeline_mode = #tpu.pipeline_mode<synchronous>, transform_indices = @transform_8, window_bounds = array<i64: 1, 6>}, {transform_indices = @transform_9, window_bounds = array<i64: 1, 4, 256>}]} {
    %c0 = arith.constant 0 : index
    %c0_0 = arith.constant 0 : index
    %c0_1 = arith.constant 0 : index
    %0 = vector.load %arg1[%c0, %c0_0, %c0_1] : memref<1x4x256xf32, #tpu.memory_space<vmem>>, vector<1x4x256xf32>
    %1 = vector.shape_cast %0 : vector<1x4x256xf32> to vector<4x256xf32>
    %c0_2 = arith.constant 0 : index
    %c0_3 = arith.constant 0 : index
    %c0_4 = arith.constant 0 : index
    %2 = vector.load %arg2[%c0_2, %c0_3, %c0_4] : memref<1x32x1xf32, #tpu.memory_space<vmem>>, vector<1x32x1xf32>
    %3 = vector.shape_cast %2 : vector<1x32x1xf32> to vector<32x1xf32>
    %c0_5 = arith.constant 0 : index
    %c0_6 = arith.constant 0 : index
    %c0_7 = arith.constant 0 : index
    %4 = vector.load %arg3[%c0_5, %c0_6, %c0_7] : memref<1x1x32xf32, #tpu.memory_space<vmem>>, vector<1x1x32xf32>
    %5 = vector.shape_cast %4 : vector<1x1x32xf32> to vector<1x32xf32>
    %c0_8 = arith.constant 0 : index
    %c0_9 = arith.constant 0 : index
    %6 = vector.load %arg4[%c0_8, %c0_9] : memref<32x4xf32, #tpu.memory_space<vmem>>, vector<32x4xf32>
    %cst = arith.constant dense<0.000000e+00> : vector<32x256xf32>
    %7 = tpu.matmul %6, %1, %cst {dimension_numbers = #tpu.dot_dimension_numbers<[1], [0], [0], [1], [0, 0, 1, 1], [], []>} : vector<32x4xf32>, vector<4x256xf32>, vector<32x256xf32> -> vector<32x256xf32>
    %8 = vector.broadcast %3 : vector<32x1xf32> to vector<32x256xf32>
    %9 = arith.addf %7, %8 : vector<32x256xf32>
    %10 = arith.negf %9 : vector<32x256xf32>
    %11 = math.exp %10 : vector<32x256xf32>
    %cst_10 = arith.constant 1.000000e+00 : f32
    %12 = vector.broadcast %cst_10 : f32 to vector<32x256xf32>
    %13 = arith.addf %12, %11 : vector<32x256xf32>
    %14 = arith.divf %12, %13 : vector<32x256xf32>
    %15 = arith.mulf %9, %14 : vector<32x256xf32>
    %c0_11 = arith.constant 0 : index
    %c0_12 = arith.constant 0 : index
    %16 = vector.load %arg5[%c0_11, %c0_12] : memref<4x32xf32, #tpu.memory_space<vmem>>, vector<4x32xf32>
    %cst_13 = arith.constant dense<0.000000e+00> : vector<4x256xf32>
    %17 = tpu.matmul %16, %15, %cst_13 {dimension_numbers = #tpu.dot_dimension_numbers<[1], [0], [0], [1], [0, 0, 1, 1], [], []>} : vector<4x32xf32>, vector<32x256xf32>, vector<4x256xf32> -> vector<4x256xf32>
    %c0_14 = arith.constant 0 : index
    %c0_15 = arith.constant 0 : index
    %18 = vector.load %arg6[%c0_14, %c0_15] : memref<4x1xf32, #tpu.memory_space<vmem>>, vector<4x1xf32>
    %19 = vector.broadcast %18 : vector<4x1xf32> to vector<4x256xf32>
    %20 = arith.addf %17, %19 : vector<4x256xf32>
    %cst_16 = arith.constant dense<0.000000e+00> : vector<4xf32>
    %21 = vector.multi_reduction <add>, %1, %cst_16 [1] : vector<4x256xf32> to vector<4xf32>
    %22 = vector.shape_cast %21 : vector<4xf32> to vector<4x1xf32>
    %cst_17 = arith.constant 2.560000e+02 : f32
    %23 = vector.broadcast %cst_17 : f32 to vector<4x1xf32>
    %24 = arith.divf %22, %23 : vector<4x1xf32>
    %c0_18 = arith.constant 0 : index
    %c0_19 = arith.constant 0 : index
    %25 = vector.load %arg7[%c0_18, %c0_19] : memref<4x32xf32, #tpu.memory_space<vmem>>, vector<4x32xf32>
    %26 = vector.broadcast %24 : vector<4x1xf32> to vector<4x32xf32>
    %27 = arith.mulf %26, %25 : vector<4x32xf32>
    %cst_20 = arith.constant dense<0.000000e+00> : vector<32xf32>
    %28 = vector.multi_reduction <add>, %27, %cst_20 [0] : vector<4x32xf32> to vector<32xf32>
    %29 = vector.shape_cast %28 : vector<32xf32> to vector<1x32xf32>
    %30 = arith.addf %29, %5 : vector<1x32xf32>
    %31 = arith.negf %30 : vector<1x32xf32>
    %32 = math.exp %31 : vector<1x32xf32>
    %cst_21 = arith.constant 1.000000e+00 : f32
    %33 = vector.broadcast %cst_21 : f32 to vector<1x32xf32>
    %34 = arith.addf %33, %32 : vector<1x32xf32>
    %35 = arith.divf %33, %34 : vector<1x32xf32>
    %36 = arith.mulf %30, %35 : vector<1x32xf32>
    %c0_22 = arith.constant 0 : index
    %c0_23 = arith.constant 0 : index
    %37 = vector.load %arg8[%c0_22, %c0_23] : memref<32x6xf32, #tpu.memory_space<vmem>>, vector<32x6xf32>
    %cst_24 = arith.constant dense<0.000000e+00> : vector<1x6xf32>
    %38 = tpu.matmul %36, %37, %cst_24 {dimension_numbers = #tpu.dot_dimension_numbers<[1], [0], [0], [1], [0, 0, 1, 1], [], []>} : vector<1x32xf32>, vector<32x6xf32>, vector<1x6xf32> -> vector<1x6xf32>
    %c0_25 = arith.constant 0 : index
    %c0_26 = arith.constant 0 : index
    %39 = vector.load %arg9[%c0_25, %c0_26] : memref<1x6xf32, #tpu.memory_space<vmem>>, vector<1x6xf32>
    %40 = arith.addf %38, %39 : vector<1x6xf32>
    %cst_27 = arith.constant dense<0xFF800000> : vector<1xf32>
    %41 = vector.multi_reduction <maximumf>, %40, %cst_27 [1] : vector<1x6xf32> to vector<1xf32>
    %42 = vector.shape_cast %41 : vector<1xf32> to vector<1x1xf32>
    %43 = vector.broadcast %42 : vector<1x1xf32> to vector<1x6xf32>
    %44 = arith.subf %40, %43 : vector<1x6xf32>
    %45 = math.exp %44 : vector<1x6xf32>
    %cst_28 = arith.constant dense<0.000000e+00> : vector<1xf32>
    %46 = vector.multi_reduction <add>, %45, %cst_28 [1] : vector<1x6xf32> to vector<1xf32>
    %47 = vector.shape_cast %46 : vector<1xf32> to vector<1x1xf32>
    %48 = tpu.reciprocal %47 {approx = true} : vector<1x1xf32> -> vector<1x1xf32>
    %49 = vector.broadcast %48 : vector<1x1xf32> to vector<1x6xf32>
    %50 = arith.mulf %45, %49 : vector<1x6xf32>
    %51 = tpu.iota {dimensions = array<i32: 1>} : vector<1x6xi32>
    %c2_i32 = arith.constant 2 : i32
    %52 = vector.broadcast %c2_i32 : i32 to vector<1x6xi32>
    %53 = arith.cmpi eq, %51, %52 : vector<1x6xi32>
    %54 = arith.extui %53 : vector<1x6xi1> to vector<1x6xi32>
    %55 = arith.sitofp %54 : vector<1x6xi32> to vector<1x6xf32>
    %56 = arith.subf %55, %50 : vector<1x6xf32>
    %c0_29 = arith.constant 0 : index
    %c0_30 = arith.constant 0 : index
    %57 = vector.load %arg8[%c0_29, %c0_30] : memref<32x6xf32, #tpu.memory_space<vmem>>, vector<32x6xf32>
    %cst_31 = arith.constant dense<0.000000e+00> : vector<1x32xf32>
    %58 = tpu.matmul %56, %57, %cst_31 {dimension_numbers = #tpu.dot_dimension_numbers<[1], [1], [0], [0], [0, 0, 1, 0], [], []>} : vector<1x6xf32>, vector<32x6xf32>, vector<1x32xf32> -> vector<1x32xf32>
    %cst_32 = arith.constant 1.000000e+00 : f32
    %59 = vector.broadcast %cst_32 : f32 to vector<1x32xf32>
    %60 = arith.subf %59, %35 : vector<1x32xf32>
    %61 = arith.mulf %30, %60 : vector<1x32xf32>
    %cst_33 = arith.constant 1.000000e+00 : f32
    %62 = vector.broadcast %cst_33 : f32 to vector<1x32xf32>
    %63 = arith.addf %62, %61 : vector<1x32xf32>
    %64 = arith.mulf %35, %63 : vector<1x32xf32>
    %65 = arith.mulf %58, %64 : vector<1x32xf32>
    %c0_34 = arith.constant 0 : index
    %c0_35 = arith.constant 0 : index
    %66 = vector.load %arg7[%c0_34, %c0_35] : memref<4x32xf32, #tpu.memory_space<vmem>>, vector<4x32xf32>
    %67 = vector.broadcast %65 : vector<1x32xf32> to vector<4x32xf32>
    %68 = arith.mulf %66, %67 : vector<4x32xf32>
    %cst_36 = arith.constant dense<0.000000e+00> : vector<4xf32>
    %69 = vector.multi_reduction <add>, %68, %cst_36 [1] : vector<4x32xf32> to vector<4xf32>
    %70 = vector.shape_cast %69 : vector<4xf32> to vector<4x1xf32>
    %cst_37 = arith.constant 0.005859375 : f32
    %71 = vector.broadcast %cst_37 : f32 to vector<4x1xf32>
    %72 = arith.mulf %71, %70 : vector<4x1xf32>
    %73 = vector.broadcast %72 : vector<4x1xf32> to vector<4x256xf32>
    %74 = arith.addf %20, %73 : vector<4x256xf32>
    %c0_38 = arith.constant 0 : index
    %c0_39 = arith.constant 0 : index
    %c0_40 = arith.constant 0 : index
    %75 = vector.load %arg10[%c0_38, %c0_39, %c0_40] : memref<1x4x256xf32, #tpu.memory_space<vmem>>, vector<1x4x256xf32>
    %76 = vector.shape_cast %75 : vector<1x4x256xf32> to vector<4x256xf32>
    %77 = vector.shape_cast %74 : vector<4x256xf32> to vector<1x4x256xf32>
    tpu.vector_store %arg10[%c0_38, %c0_39, %c0_40], %77 {strides = array<i32>} : memref<1x4x256xf32, #tpu.memory_space<vmem>>, vector<1x4x256xf32>,
    return
  }
  func.func @transform_0(%arg0: i32) -> (i32, i32, i32) {
    %c0_i32 = arith.constant 0 : i32
    %c0_i32_0 = arith.constant 0 : i32
    %c0_i32_1 = arith.constant 0 : i32
    return %arg0, %c0_i32, %c0_i32_0 : i32, i32, i32
  }
  func.func @transform_1(%arg0: i32) -> (i32, i32, i32) {
    %c0_i32 = arith.constant 0 : i32
    %c0_i32_0 = arith.constant 0 : i32
    %c0_i32_1 = arith.constant 0 : i32
    return %arg0, %c0_i32, %c0_i32_0 : i32, i32, i32
  }
  func.func @transform_2(%arg0: i32) -> (i32, i32, i32) {
    %c0_i32 = arith.constant 0 : i32
    %c0_i32_0 = arith.constant 0 : i32
    %c0_i32_1 = arith.constant 0 : i32
    return %arg0, %c0_i32, %c0_i32_0 : i32, i32, i32
  }
  func.func @transform_3(%arg0: i32) -> (i32, i32) {
    %c0_i32 = arith.constant 0 : i32
    %c0_i32_0 = arith.constant 0 : i32
    %c0_i32_1 = arith.constant 0 : i32
    return %c0_i32, %c0_i32_0 : i32, i32
  }
  func.func @transform_4(%arg0: i32) -> (i32, i32) {
    %c0_i32 = arith.constant 0 : i32
    %c0_i32_0 = arith.constant 0 : i32
    %c0_i32_1 = arith.constant 0 : i32
    return %c0_i32, %c0_i32_0 : i32, i32
  }
  func.func @transform_5(%arg0: i32) -> (i32, i32) {
    %c0_i32 = arith.constant 0 : i32
    %c0_i32_0 = arith.constant 0 : i32
    %c0_i32_1 = arith.constant 0 : i32
    return %c0_i32, %c0_i32_0 : i32, i32
  }
  func.func @transform_6(%arg0: i32) -> (i32, i32) {
    %c0_i32 = arith.constant 0 : i32
    %c0_i32_0 = arith.constant 0 : i32
    %c0_i32_1 = arith.constant 0 : i32
    return %c0_i32, %c0_i32_0 : i32, i32
  }
  func.func @transform_7(%arg0: i32) -> (i32, i32) {
    %c0_i32 = arith.constant 0 : i32
    %c0_i32_0 = arith.constant 0 : i32
    %c0_i32_1 = arith.constant 0 : i32
    return %c0_i32, %c0_i32_0 : i32, i32
  }
  func.func @transform_8(%arg0: i32) -> (i32, i32) {
    %c0_i32 = arith.constant 0 : i32
    %c0_i32_0 = arith.constant 0 : i32
    %c0_i32_1 = arith.constant 0 : i32
    return %c0_i32, %c0_i32_0 : i32, i32
  }
  func.func @transform_9(%arg0: i32) -> (i32, i32, i32) {
    %c0_i32 = arith.constant 0 : i32
    %c0_i32_0 = arith.constant 0 : i32
    %c0_i32_1 = arith.constant 0 : i32
    return %arg0, %c0_i32, %c0_i32_0 : i32, i32, i32
  }
}

</mosaic_0001>

<llo_original>
// kernel: tpu_custom_call.1
$region0: #{tpu_custom_call.1}
  #allocation0 [shape = 'u32[]', space=smem, size = 0x4, offset = 0x4, fixed_abs, tag = 'smem constant byte address 0x4 - core index']
  #allocation1 [shape = 'u32[72,128]{1,0:T(1,128)}', space=vmem, size = 0x9000, scoped, tag = 'internal scratch']
  %s0 = inlined_call_operand.vmem [shape: f32[2,4,256], index: 0, kind: input, shape index: {}]
  %s1 = inlined_call_operand.vmem [shape: f32[2,32,1], index: 1, kind: input, shape index: {}]
  %s2 = inlined_call_operand.vmem [shape: f32[2,1,32], index: 2, kind: input, shape index: {}]
  %s3 = inlined_call_operand.vmem [shape: f32[32,4], index: 3, kind: input, shape index: {}]
  %s4 = inlined_call_operand.vmem [shape: f32[4,32], index: 4, kind: input, shape index: {}]
  %s5 = inlined_call_operand.vmem [shape: f32[4,1], index: 5, kind: input, shape index: {}]
  %s6 = inlined_call_operand.vmem [shape: f32[4,32], index: 6, kind: input, shape index: {}]
  %s7 = inlined_call_operand.vmem [shape: f32[32,6], index: 7, kind: input, shape index: {}]
  %s8 = inlined_call_operand.vmem [shape: f32[1,6], index: 8, kind: input, shape index: {}]
  %s9 = inlined_call_operand.hbm [shape: f32[2,4,256], index: 9, kind: output, shape index: {}]
  %s10 = sld [smem:[#allocation0]]
  $region69: #{tpu_custom_call.1} parent=0
    _
  %s12 = ssub.s32 1, %s10
  %s13 = scalar_select 0, %s12, %s10
  $region1: #{tpu_custom_call.1} parent=0
    #allocation2 [shape = 'u8[8192]{0}', space=vmem, size = 0x2000, scoped, tag = 'output window, operand 0']
    #allocation3 [shape = 's32[2]{0}', space=sflag, size = 0x8, scoped, tag = 'scoped memory for tpu_custom_call.1']
    %14 = vsyncpa [#allocation3], 0
    %s15 = scalar_lea.sflag [#allocation3], 1
    %16 = vsyncpa %s15, 0
    loop: start=0, step=1, limit=4
    $region2: #{tpu_custom_call.1} parent=1 // loop_pre_header
      _
    $region3: #{tpu_custom_call.1} parent=1 // loop_header
      %s18 = sphi 0, %s22
      %p19 = scmp.ge.s32.totalorder %s18, 4
      %s28 = sphi 0, %s30
      %s31 = sphi 0, %s28
      %s32 = sphi 0, %s31
      %s48 = sphi 0, %s32
      %s54 = sphi 0, %s56
      %s57 = sphi 0, %s54
      %s58 = sphi 0, %s57
      %s74 = sphi 0, %s58
      %s80 = sphi 0, %s82
      %s83 = sphi 0, %s80
      %s84 = sphi 0, %s83
      %s100 = sphi 0, %s84
      %s104 = sphi 0, %s104
      %s106 = sphi 0, %s104
      %s107 = sphi 0, %s106
      %s121 = sphi 0, %s107
      %s125 = sphi 0, %s125
      %s127 = sphi 0, %s125
      %s128 = sphi 0, %s127
      %s142 = sphi 0, %s128
      %s146 = sphi 0, %s146
      %s148 = sphi 0, %s146
      %s149 = sphi 0, %s148
      %s163 = sphi 0, %s149
      %s167 = sphi 0, %s167
      %s169 = sphi 0, %s167
      %s170 = sphi 0, %s169
      %s184 = sphi 0, %s170
      %s188 = sphi 0, %s188
      %s190 = sphi 0, %s188
      %s191 = sphi 0, %s190
      %s205 = sphi 0, %s191
      %s209 = sphi 0, %s209
      %s211 = sphi 0, %s209
      %s212 = sphi 0, %s211
      %s226 = sphi 0, %s212
      %s232 = sphi 0, %s234
      %s235 = sphi 0, %s232
      %s236 = sphi 0, %s235
      %s252 = sphi 0, %s236
    $region4: #{tpu_custom_call.1} parent=1 // loop_header_branch
      %21 = sbr.rel (%p19) target = $region8
    $region5: #{tpu_custom_call.1} parent=1 // loop_body
      %s23 = ssub.s32 %s18, 1
      %s24 = ssub.s32 %s18, 2
      %s25 = sadd.s32 %s18, 1
      %s26 = ssub.s32 %s18, %s25
      %p27 = scmp.eq.s32.totalorder %s26, 0
      %s29 = sadd.s32 %s28, 1
      %s30 = scalar_select %p27, %s28, %s29
      %p33 = pneg %p27
      %p34 = scmp.eq.s32.totalorder %s18, 1
      %p35 = por %p33, %p34
      %p36 = scmp.ne.s32.totalorder %s28, %s31
      %p37 = scmp.eq.s32.totalorder %s18, 0
      %p38 = por %p36, %p37
      %p39 = scmp.ne.s32.totalorder %s28, %s31
      %p40 = scmp.eq.s32.totalorder %s23, 1
      %p41 = por %p39, %p40
      %p42 = scmp.ne.s32.totalorder %s31, %s32
      %p43 = scmp.eq.s32.totalorder %s23, 0
      %p44 = por %p42, %p43
      %p45 = scmp.ne.s32.totalorder %s31, %s32
      %p46 = scmp.eq.s32.totalorder %s24, 1
      %p47 = por %p45, %p46
      %p49 = scmp.ne.s32.totalorder %s32, %s48
      %p50 = scmp.eq.s32.totalorder %s24, 0
      %p51 = por %p49, %p50
      %s52 = ssub.s32 %s18, %s25
      %p53 = scmp.eq.s32.totalorder %s52, 0
      %s55 = sadd.s32 %s54, 1
      %s56 = scalar_select %p53, %s54, %s55
      %p59 = pneg %p53
      %p60 = scmp.eq.s32.totalorder %s18, 1
      %p61 = por %p59, %p60
      %p62 = scmp.ne.s32.totalorder %s54, %s57
      %p63 = scmp.eq.s32.totalorder %s18, 0
      %p64 = por %p62, %p63
      %p65 = scmp.ne.s32.totalorder %s54, %s57
      %p66 = scmp.eq.s32.totalorder %s23, 1
      %p67 = por %p65, %p66
      %p68 = scmp.ne.s32.totalorder %s57, %s58
      %p69 = scmp.eq.s32.totalorder %s23, 0
      %p70 = por %p68, %p69
      %p71 = scmp.ne.s32.totalorder %s57, %s58
      %p72 = scmp.eq.s32.totalorder %s24, 1
      %p73 = por %p71, %p72
      %p75 = scmp.ne.s32.totalorder %s58, %s74
      %p76 = scmp.eq.s32.totalorder %s24, 0
      %p77 = por %p75, %p76
      %s78 = ssub.s32 %s18, %s25
      %p79 = scmp.eq.s32.totalorder %s78, 0
      %s81 = sadd.s32 %s80, 1
      %s82 = scalar_select %p79, %s80, %s81
      %p85 = pneg %p79
      %p86 = scmp.eq.s32.totalorder %s18, 1
      %p87 = por %p85, %p86
      %p88 = scmp.ne.s32.totalorder %s80, %s83
      %p89 = scmp.eq.s32.totalorder %s18, 0
      %p90 = por %p88, %p89
      %p91 = scmp.ne.s32.totalorder %s80, %s83
      %p92 = scmp.eq.s32.totalorder %s23, 1
      %p93 = por %p91, %p92
      %p94 = scmp.ne.s32.totalorder %s83, %s84
      %p95 = scmp.eq.s32.totalorder %s23, 0
      %p96 = por %p94, %p95
      %p97 = scmp.ne.s32.totalorder %s83, %s84
      %p98 = scmp.eq.s32.totalorder %s24, 1
      %p99 = por %p97, %p98
      %p101 = scmp.ne.s32.totalorder %s84, %s100
      %p102 = scmp.eq.s32.totalorder %s24, 0
      %p103 = por %p101, %p102
      %s105 = sadd.s32 %s104, 1
      %p108 = scmp.eq.s32.totalorder %s18, 1
      %p109 = scmp.ne.s32.totalorder %s104, %s106
      %p110 = scmp.eq.s32.totalorder %s18, 0
      %p111 = por %p109, %p110
      %p112 = scmp.ne.s32.totalorder %s104, %s106
      %p113 = scmp.eq.s32.totalorder %s23, 1
      %p114 = por %p112, %p113
      %p115 = scmp.ne.s32.totalorder %s106, %s107
      %p116 = scmp.eq.s32.totalorder %s23, 0
      %p117 = por %p115, %p116
      %p118 = scmp.ne.s32.totalorder %s106, %s107
      %p119 = scmp.eq.s32.totalorder %s24, 1
      %p120 = por %p118, %p119
      %p122 = scmp.ne.s32.totalorder %s107, %s121
      %p123 = scmp.eq.s32.totalorder %s24, 0
      %p124 = por %p122, %p123
      %s126 = sadd.s32 %s125, 1
      %p129 = scmp.eq.s32.totalorder %s18, 1
      %p130 = scmp.ne.s32.totalorder %s125, %s127
      %p131 = scmp.eq.s32.totalorder %s18, 0
      %p132 = por %p130, %p131
      %p133 = scmp.ne.s32.totalorder %s125, %s127
      %p134 = scmp.eq.s32.totalorder %s23, 1
      %p135 = por %p133, %p134
      %p136 = scmp.ne.s32.totalorder %s127, %s128
      %p137 = scmp.eq.s32.totalorder %s23, 0
      %p138 = por %p136, %p137
      %p139 = scmp.ne.s32.totalorder %s127, %s128
      %p140 = scmp.eq.s32.totalorder %s24, 1
      %p141 = por %p139, %p140
      %p143 = scmp.ne.s32.totalorder %s128, %s142
      %p144 = scmp.eq.s32.totalorder %s24, 0
      %p145 = por %p143, %p144
      %s147 = sadd.s32 %s146, 1
      %p150 = scmp.eq.s32.totalorder %s18, 1
      %p151 = scmp.ne.s32.totalorder %s146, %s148
      %p152 = scmp.eq.s32.totalorder %s18, 0
      %p153 = por %p151, %p152
      %p154 = scmp.ne.s32.totalorder %s146, %s148
      %p155 = scmp.eq.s32.totalorder %s23, 1
      %p156 = por %p154, %p155
      %p157 = scmp.ne.s32.totalorder %s148, %s149
      %p158 = scmp.eq.s32.totalorder %s23, 0
      %p159 = por %p157, %p158
      %p160 = scmp.ne.s32.totalorder %s148, %s149
      %p161 = scmp.eq.s32.totalorder %s24, 1
      %p162 = por %p160, %p161
      %p164 = scmp.ne.s32.totalorder %s149, %s163
      %p165 = scmp.eq.s32.totalorder %s24, 0
      %p166 = por %p164, %p165
      %s168 = sadd.s32 %s167, 1
      %p171 = scmp.eq.s32.totalorder %s18, 1
      %p172 = scmp.ne.s32.totalorder %s167, %s169
      %p173 = scmp.eq.s32.totalorder %s18, 0
      %p174 = por %p172, %p173
      %p175 = scmp.ne.s32.totalorder %s167, %s169
      %p176 = scmp.eq.s32.totalorder %s23, 1
      %p177 = por %p175, %p176
      %p178 = scmp.ne.s32.totalorder %s169, %s170
      %p179 = scmp.eq.s32.totalorder %s23, 0
      %p180 = por %p178, %p179
      %p181 = scmp.ne.s32.totalorder %s169, %s170
      %p182 = scmp.eq.s32.totalorder %s24, 1
      %p183 = por %p181, %p182
      %p185 = scmp.ne.s32.totalorder %s170, %s184
      %p186 = scmp.eq.s32.totalorder %s24, 0
      %p187 = por %p185, %p186
      %s189 = sadd.s32 %s188, 1
      %p192 = scmp.eq.s32.totalorder %s18, 1
      %p193 = scmp.ne.s32.totalorder %s188, %s190
      %p194 = scmp.eq.s32.totalorder %s18, 0
      %p195 = por %p193, %p194
      %p196 = scmp.ne.s32.totalorder %s188, %s190
      %p197 = scmp.eq.s32.totalorder %s23, 1
      %p198 = por %p196, %p197
      %p199 = scmp.ne.s32.totalorder %s190, %s191
      %p200 = scmp.eq.s32.totalorder %s23, 0
      %p201 = por %p199, %p200
      %p202 = scmp.ne.s32.totalorder %s190, %s191
      %p203 = scmp.eq.s32.totalorder %s24, 1
      %p204 = por %p202, %p203
      %p206 = scmp.ne.s32.totalorder %s191, %s205
      %p207 = scmp.eq.s32.totalorder %s24, 0
      %p208 = por %p206, %p207
      %s210 = sadd.s32 %s209, 1
      %p213 = scmp.eq.s32.totalorder %s18, 1
      %p214 = scmp.ne.s32.totalorder %s209, %s211
      %p215 = scmp.eq.s32.totalorder %s18, 0
      %p216 = por %p214, %p215
      %p217 = scmp.ne.s32.totalorder %s209, %s211
      %p218 = scmp.eq.s32.totalorder %s23, 1
      %p219 = por %p217, %p218
      %p220 = scmp.ne.s32.totalorder %s211, %s212
      %p221 = scmp.eq.s32.totalorder %s23, 0
      %p222 = por %p220, %p221
      %p223 = scmp.ne.s32.totalorder %s211, %s212
      %p224 = scmp.eq.s32.totalorder %s24, 1
      %p225 = por %p223, %p224
      %p227 = scmp.ne.s32.totalorder %s212, %s226
      %p228 = scmp.eq.s32.totalorder %s24, 0
      %p229 = por %p227, %p228
      %s230 = ssub.s32 %s18, %s25
      %p231 = scmp.eq.s32.totalorder %s230, 0
      %s233 = sadd.s32 %s232, 1
      %s234 = scalar_select %p231, %s232, %s233
      %p237 = pneg %p231
      %p238 = scmp.eq.s32.totalorder %s18, 1
      %p239 = por %p237, %p238
      %p240 = scmp.ne.s32.totalorder %s232, %s235
      %p241 = scmp.eq.s32.totalorder %s18, 0
      %p242 = por %p240, %p241
      %p243 = scmp.ne.s32.totalorder %s232, %s235
      %p244 = scmp.eq.s32.totalorder %s23, 1
      %p245 = por %p243, %p244
      %p246 = scmp.ne.s32.totalorder %s235, %s236
      %p247 = scmp.eq.s32.totalorder %s23, 0
      %p248 = por %p246, %p247
      %p249 = scmp.ne.s32.totalorder %s235, %s236
      %p250 = scmp.eq.s32.totalorder %s24, 1
      %p251 = por %p249, %p250
      %p253 = scmp.ne.s32.totalorder %s236, %s252
      %p254 = scmp.eq.s32.totalorder %s24, 0
      %p255 = por %p253, %p254
      %p256 = scmp.le.s32.totalorder 1, %s18
      %p257 = scmp.lt.s32.totalorder %s18, 3
      %p258 = pnand %p256, %p257
      %p259 = pneg %p258
      // Predicated region
      $region9: #{tpu_custom_call.1} parent=5 // pred_check
        _
      $region10: #{tpu_custom_call.1} parent=5 // pred_check_branch
        %261 = sbr.rel (%p258) target = $region12
      $region11: #{tpu_custom_call.1} parent=5 // pred_region
        %s262 = ssub.s32 %s18, 1
        // Predicated region
        $region13: #{tpu_custom_call.1} parent=11 // pred_check
          %p263 = pneg %p117
        $region14: #{tpu_custom_call.1} parent=11 // pred_check_branch
          %265 = sbr.rel (%p263) target = $region16
        $region15: #{tpu_custom_call.1} parent=11 // pred_region
          _
        $region16: #{tpu_custom_call.1} parent=11 // pred_fallthru
          _
        // Predicated region
        $region17: #{tpu_custom_call.1} parent=11 // pred_check
          %p266 = pneg %p138
        $region18: #{tpu_custom_call.1} parent=11 // pred_check_branch
          %268 = sbr.rel (%p266) target = $region20
        $region19: #{tpu_custom_call.1} parent=11 // pred_region
          _
        $region20: #{tpu_custom_call.1} parent=11 // pred_fallthru
          _
        // Predicated region
        $region21: #{tpu_custom_call.1} parent=11 // pred_check
          %p269 = pneg %p159
        $region22: #{tpu_custom_call.1} parent=11 // pred_check_branch
          %271 = sbr.rel (%p269) target = $region24
        $region23: #{tpu_custom_call.1} parent=11 // pred_region
          _
        $region24: #{tpu_custom_call.1} parent=11 // pred_fallthru
          _
        // Predicated region
        $region25: #{tpu_custom_call.1} parent=11 // pred_check
          %p272 = pneg %p180
        $region26: #{tpu_custom_call.1} parent=11 // pred_check_branch
          %274 = sbr.rel (%p272) target = $region28
        $region27: #{tpu_custom_call.1} parent=11 // pred_region
          _
        $region28: #{tpu_custom_call.1} parent=11 // pred_fallthru
          _
        // Predicated region
        $region29: #{tpu_custom_call.1} parent=11 // pred_check
          %p275 = pneg %p201
        $region30: #{tpu_custom_call.1} parent=11 // pred_check_branch
          %277 = sbr.rel (%p275) target = $region32
        $region31: #{tpu_custom_call.1} parent=11 // pred_region
          _
        $region32: #{tpu_custom_call.1} parent=11 // pred_fallthru
          _
        // Predicated region
        $region33: #{tpu_custom_call.1} parent=11 // pred_check
          %p278 = pneg %p222
        $region34: #{tpu_custom_call.1} parent=11 // pred_check_branch
          %280 = sbr.rel (%p278) target = $region36
        $region35: #{tpu_custom_call.1} parent=11 // pred_region
          _
        $region36: #{tpu_custom_call.1} parent=11 // pred_fallthru
          _
      $region12: #{tpu_custom_call.1} parent=5 // pred_fallthru
        _
      %p281 = scmp.lt.s32.totalorder %s18, 2
      // Predicated region
      $region37: #{tpu_custom_call.1} parent=5 // pred_check
        %p282 = pneg %p281
      $region38: #{tpu_custom_call.1} parent=5 // pred_check_branch
        %284 = sbr.rel (%p282) target = $region40
      $region39: #{tpu_custom_call.1} parent=5 // pred_region
        // Predicated region
        $region41: #{tpu_custom_call.1} parent=39 // pred_check
          %p285 = pneg %p38
        $region42: #{tpu_custom_call.1} parent=39 // pred_check_branch
          %287 = sbr.rel (%p285) target = $region44
        $region43: #{tpu_custom_call.1} parent=39 // pred_region
          %p288 = scmp.lt.s32.totalorder %s18, 1
          %s289 = scalar_select %p288, %s18, 1
          %s290 = smul.addr %s289, 2
          %s291 = smul.addr %s290, 4
          %s292 = scalar_lea.vmem %s0, %s291
        $region44: #{tpu_custom_call.1} parent=39 // pred_fallthru
          _
        // Predicated region
        $region45: #{tpu_custom_call.1} parent=39 // pred_check
          %p293 = pneg %p64
        $region46: #{tpu_custom_call.1} parent=39 // pred_check_branch
          %295 = sbr.rel (%p293) target = $region48
        $region47: #{tpu_custom_call.1} parent=39 // pred_region
          %p296 = scmp.lt.s32.totalorder %s18, 1
          %s297 = scalar_select %p296, %s18, 1
          %s298 = smul.addr %s297, 4
          %s299 = smul.addr %s298, 8
          %s300 = scalar_lea.vmem %s1, %s299
        $region48: #{tpu_custom_call.1} parent=39 // pred_fallthru
          _
        // Predicated region
        $region49: #{tpu_custom_call.1} parent=39 // pred_check
          %p301 = pneg %p90
        $region50: #{tpu_custom_call.1} parent=39 // pred_check_branch
          %303 = sbr.rel (%p301) target = $region52
        $region51: #{tpu_custom_call.1} parent=39 // pred_region
          %p304 = scmp.lt.s32.totalorder %s18, 1
          %s305 = scalar_select %p304, %s18, 1
          %s306 = scalar_lea.vmem %s2, %s305
        $region52: #{tpu_custom_call.1} parent=39 // pred_fallthru
          _
      $region40: #{tpu_custom_call.1} parent=5 // pred_fallthru
        _
      %p307 = scmp.le.s32.totalorder 1, %s18
      %p308 = scmp.lt.s32.totalorder %s18, 3
      %p309 = pnand %p307, %p308
      %p310 = pneg %p309
      // Predicated region
      $region53: #{tpu_custom_call.1} parent=5 // pred_check
        _
      $region54: #{tpu_custom_call.1} parent=5 // pred_check_branch
        %312 = sbr.rel (%p309) target = $region56
      $region55: #{tpu_custom_call.1} parent=5 // pred_region
        %s313 = ssub.s32 %s18, 1
        %p314 = scmp.lt.s32.totalorder %s23, 1
        %s315 = scalar_select %p314, %s23, 1
        %s316 = smul.addr %s315, 2
        %s317 = smul.addr %s316, 4
        %s318 = scalar_lea.vmem %s0, %s317
        %p319 = pneg %p44
        %p320 = pneg %p41
        %p321 = scmp.lt.s32.totalorder %s23, 1
        %s322 = scalar_select %p321, %s23, 1
        %s323 = smul.addr %s322, 4
        %s324 = smul.addr %s323, 8
        %s325 = scalar_lea.vmem %s1, %s324
        %p326 = pneg %p70
        %p327 = pneg %p67
        %p328 = scmp.lt.s32.totalorder %s23, 1
        %s329 = scalar_select %p328, %s23, 1
        %s330 = scalar_lea.vmem %s2, %s329
        %p331 = pneg %p96
        %p332 = pneg %p93
        %p333 = pneg %p117
        %p334 = pneg %p114
        %p335 = pneg %p138
        %p336 = pneg %p135
        %p337 = pneg %p159
        %p338 = pneg %p156
        %p339 = pneg %p180
        %p340 = pneg %p177
        %p341 = pneg %p201
        %p342 = pneg %p198
        %p343 = pneg %p222
        %p344 = pneg %p219
        %p345 = pneg %p248
        %p346 = pneg %p245
        %s347 = sand.u32 %s235, 1
        %s348 = scalar_lea.sflag [#allocation3], %s347
        %s349 = sand.u32 %s235, 1
        %s350 = smul.addr %s349, 8
        %s351 = scalar_lea.vmem [#allocation2], %s350
        %p352 = scmp.lt.s32.totalorder %s23, 1
        %s353 = scalar_select %p352, %s23, 1
        %s354 = smul.addr %s353, 2
        %s355 = smul.addr %s354, 4
        %s356 = scalar_lea.vmem %s0, %s355
        %p357 = scmp.lt.s32.totalorder %s23, 1
        %s358 = scalar_select %p357, %s23, 1
        %s359 = smul.addr %s358, 4
        %s360 = smul.addr %s359, 8
        %s361 = scalar_lea.vmem %s1, %s360
        %p362 = scmp.lt.s32.totalorder %s23, 1
        %s363 = scalar_select %p362, %s23, 1
        %s364 = scalar_lea.vmem %s2, %s363
        %v365 = vld [vmem:[%s356] sm:$0xff]
        %v366 = vld [vmem:[%s361] sm:$0xff]
        %v367 = vld [vmem:[%s361 + $0x8] sm:$0xff]
        %v368 = vld [vmem:[%s361 + $0x10] sm:$0xff]
        %v369 = vld [vmem:[%s361 + $0x18] sm:$0xff]
        %v370 = vld [vmem:[%s364] sm:$0x1]
        %v371 = vld [vmem:[%s3] sm:$0xff]
        %v372 = vld [vmem:[%s3 + $0x8] sm:$0xff]
        %v373 = vld [vmem:[%s3 + $0x10] sm:$0xff]
        %v374 = vld [vmem:[%s3 + $0x18] sm:$0xff]
        %376 = vset.pattern.permute.xlu0 0
        %377 = vperm.xlu0 %376, %v366
        %v378 = vpop.permute.xlu0 %377
        %381 = vset.pattern.permute.xlu0 0
        %382 = vperm.xlu0 %381, %v367
        %v383 = vpop.permute.xlu0 %382
        %386 = vset.pattern.permute.xlu0 0
        %387 = vperm.xlu0 %386, %v368
        %v388 = vpop.permute.xlu0 %387
        %391 = vset.pattern.permute.xlu0 0
        %392 = vperm.xlu0 %391, %v369
        %v393 = vpop.permute.xlu0 %392
        %396 = vst [vmem:[#allocation1] ss:$2 sm:$0xff] %v365
        %v397 = vld.sshfl [vmem:[#allocation1] sm:$0xff pattern:$0x75316420]
        %v398 = vld.sshfl [vmem:[#allocation1 + $0x8] sm:$0xff pattern:$0x75316420]
        %vm399 = vcmask 31744
        %v401 = vsel %vm399, %v371, 0
        %v404 = vsel %vm399, %v372, 0
        %v407 = vsel %vm399, %v373, 0
        %v410 = vsel %vm399, %v374, 0
        %vm412 = vcmask 1043456
        %v413 = vsel %vm412, %v397, 0
        %v415 = vsel %vm412, %v398, 0
        %417 = vmatpush.msra.mxu0 0.0
        %418 = vmatpush.msra.mxu0 0.0
        %419 = vmatpush.msra.mxu0 0.0
        %420 = vmatpush.msra.mxu0 0.0
        %421 = vmatpush.msra.mxu0 0.0
        %422 = vmatpush.msra.mxu0 0.0
        %423 = vmatpush.msra.mxu0 0.0
        %424 = vmatpush.msra.mxu0 0.0
        %425 = vmatpush.msra.mxu0 0.0
        %426 = vmatpush.msra.mxu0 0.0
        %427 = vmatpush.msra.mxu0 0.0
        %428 = vmatpush.msra.mxu0 0.0
        %429 = vmatpush.msra.mxu0 0.0
        %430 = vmatpush.msra.mxu0 0.0
        %431 = vmatpush.msra.mxu0 0.0
        %432 = vmatpush.msra.mxu0 %v413
        %433 = vmatmul.f32.gmra.mxu0 %v401
        %v434 = vpop.f32.mrf.mxu0
        %v435 = vadd.f32 %v378, %v434
        %436 = vmatmul.f32.gmra.mxu0 %v404
        %v437 = vpop.f32.mrf.mxu0
        %v438 = vadd.f32 %v383, %v437
        %439 = vmatmul.f32.gmra.mxu0 %v407
        %v440 = vpop.f32.mrf.mxu0
        %v441 = vadd.f32 %v388, %v440
        %442 = vmatmul.f32.gmra.mxu0 %v410
        %v443 = vpop.f32.mrf.mxu0
        %v444 = vadd.f32 %v393, %v443
        %445 = vdwg.mxu0
        %446 = vmatpush.msra.mxu0 0.0
        %447 = vmatpush.msra.mxu0 0.0
        %448 = vmatpush.msra.mxu0 0.0
        %449 = vmatpush.msra.mxu0 0.0
        %450 = vmatpush.msra.mxu0 0.0
        %451 = vmatpush.msra.mxu0 0.0
        %452 = vmatpush.msra.mxu0 0.0
        %453 = vmatpush.msra.mxu0 0.0
        %454 = vmatpush.msra.mxu0 0.0
        %455 = vmatpush.msra.mxu0 0.0
        %456 = vmatpush.msra.mxu0 0.0
        %457 = vmatpush.msra.mxu0 0.0
        %458 = vmatpush.msra.mxu0 0.0
        %459 = vmatpush.msra.mxu0 0.0
        %460 = vmatpush.msra.mxu0 0.0
        %461 = vmatpush.msra.mxu0 %v415
        %462 = vmatmul.f32.gmra.mxu0 %v401
        %v463 = vpop.f32.mrf.mxu0
        %v464 = vadd.f32 %v378, %v463
        %465 = vmatmul.f32.gmra.mxu0 %v404
        %v466 = vpop.f32.mrf.mxu0
        %v467 = vadd.f32 %v383, %v466
        %468 = vmatmul.f32.gmra.mxu0 %v407
        %v469 = vpop.f32.mrf.mxu0
        %v470 = vadd.f32 %v388, %v469
        %471 = vmatmul.f32.gmra.mxu0 %v410
        %v472 = vpop.f32.mrf.mxu0
        %v473 = vadd.f32 %v393, %v472
        %474 = vdwg.mxu0
        %v475 = vxor.u32 %v435, 2147483648
        %v476 = vxor.u32 %v464, 2147483648
        %v477 = vxor.u32 %v438, 2147483648
        %v478 = vxor.u32 %v467, 2147483648
        %v479 = vxor.u32 %v441, 2147483648
        %v480 = vxor.u32 %v470, 2147483648
        %v481 = vxor.u32 %v444, 2147483648
        %v482 = vxor.u32 %v473, 2147483648
        %v483 = vmul.f32 %v475, 1.442695
        %v484 = vpow.pop %v483
        %v485 = vmul.f32 %v476, 1.442695
        %v486 = vpow.pop %v485
        %v487 = vmul.f32 %v477, 1.442695
        %v488 = vpow.pop %v487
        %v489 = vmul.f32 %v478, 1.442695
        %v490 = vpow.pop %v489
        %v491 = vmul.f32 %v479, 1.442695
        %v492 = vpow.pop %v491
        %v493 = vmul.f32 %v480, 1.442695
        %v494 = vpow.pop %v493
        %v495 = vmul.f32 %v481, 1.442695
        %v496 = vpow.pop %v495
        %v497 = vmul.f32 %v482, 1.442695
        %v498 = vpow.pop %v497
        %v499 = vadd.f32 %v484, 1.0
        %v500 = vadd.f32 %v486, 1.0
        %v501 = vadd.f32 %v488, 1.0
        %v502 = vadd.f32 %v490, 1.0
        %v503 = vadd.f32 %v492, 1.0
        %v504 = vadd.f32 %v494, 1.0
        %v505 = vadd.f32 %v496, 1.0
        %v506 = vadd.f32 %v498, 1.0
        %v507 = vrcp.pop %v499
        %v508 = vmul.f32 %v499, %v507
        %v509 = vsub.f32 1.0, %v508
        %v510 = vmul.f32 %v507, %v509
        %v511 = vadd.f32 %v507, %v510
        %vm512 = vweird.f32 %v499
        %vm513 = vweird.f32 %v507
        %vm514 = vmor %vm512, %vm513
        %v515 = vsel %vm514, %v507, %v511
        %v516 = vand.u32 2147483647, %v499
        %vm517 = vcmp.eq.f32.partialorder %v516, 8.507059e+37
        %v518 = vand.u32 %v499, 2147483648
        %v519 = vor.u32 1.1754944e-38, %v518
        %v520 = vsel %vm517, %v519, %v515
        %v521 = vmul.f32 1.0, %v520
        %v522 = vrcp.pop %v500
        %v523 = vmul.f32 %v500, %v522
        %v524 = vsub.f32 1.0, %v523
        %v525 = vmul.f32 %v522, %v524
        %v526 = vadd.f32 %v522, %v525
        %vm527 = vweird.f32 %v500
        %vm528 = vweird.f32 %v522
        %vm529 = vmor %vm527, %vm528
        %v530 = vsel %vm529, %v522, %v526
        %v531 = vand.u32 2147483647, %v500
        %vm532 = vcmp.eq.f32.partialorder %v531, 8.507059e+37
        %v533 = vand.u32 %v500, 2147483648
        %v534 = vor.u32 1.1754944e-38, %v533
        %v535 = vsel %vm532, %v534, %v530
        %v536 = vmul.f32 1.0, %v535
        %v537 = vrcp.pop %v501
        %v538 = vmul.f32 %v501, %v537
        %v539 = vsub.f32 1.0, %v538
        %v540 = vmul.f32 %v537, %v539
        %v541 = vadd.f32 %v537, %v540
        %vm542 = vweird.f32 %v501
        %vm543 = vweird.f32 %v537
        %vm544 = vmor %vm542, %vm543
        %v545 = vsel %vm544, %v537, %v541
        %v546 = vand.u32 2147483647, %v501
        %vm547 = vcmp.eq.f32.partialorder %v546, 8.507059e+37
        %v548 = vand.u32 %v501, 2147483648
        %v549 = vor.u32 1.1754944e-38, %v548
        %v550 = vsel %vm547, %v549, %v545
        %v551 = vmul.f32 1.0, %v550
        %v552 = vrcp.pop %v502
        %v553 = vmul.f32 %v502, %v552
        %v554 = vsub.f32 1.0, %v553
        %v555 = vmul.f32 %v552, %v554
        %v556 = vadd.f32 %v552, %v555
        %vm557 = vweird.f32 %v502
        %vm558 = vweird.f32 %v552
        %vm559 = vmor %vm557, %vm558
        %v560 = vsel %vm559, %v552, %v556
        %v561 = vand.u32 2147483647, %v502
        %vm562 = vcmp.eq.f32.partialorder %v561, 8.507059e+37
        %v563 = vand.u32 %v502, 2147483648
        %v564 = vor.u32 1.1754944e-38, %v563
        %v565 = vsel %vm562, %v564, %v560
        %v566 = vmul.f32 1.0, %v565
        %v567 = vrcp.pop %v503
        %v568 = vmul.f32 %v503, %v567
        %v569 = vsub.f32 1.0, %v568
        %v570 = vmul.f32 %v567, %v569
        %v571 = vadd.f32 %v567, %v570
        %vm572 = vweird.f32 %v503
        %vm573 = vweird.f32 %v567
        %vm574 = vmor %vm572, %vm573
        %v575 = vsel %vm574, %v567, %v571
        %v576 = vand.u32 2147483647, %v503
        %vm577 = vcmp.eq.f32.partialorder %v576, 8.507059e+37
        %v578 = vand.u32 %v503, 2147483648
        %v579 = vor.u32 1.1754944e-38, %v578
        %v580 = vsel %vm577, %v579, %v575
        %v581 = vmul.f32 1.0, %v580
        %v582 = vrcp.pop %v504
        %v583 = vmul.f32 %v504, %v582
        %v584 = vsub.f32 1.0, %v583
        %v585 = vmul.f32 %v582, %v584
        %v586 = vadd.f32 %v582, %v585
        %vm587 = vweird.f32 %v504
        %vm588 = vweird.f32 %v582
        %vm589 = vmor %vm587, %vm588
        %v590 = vsel %vm589, %v582, %v586
        %v591 = vand.u32 2147483647, %v504
        %vm592 = vcmp.eq.f32.partialorder %v591, 8.507059e+37
        %v593 = vand.u32 %v504, 2147483648
        %v594 = vor.u32 1.1754944e-38, %v593
        %v595 = vsel %vm592, %v594, %v590
        %v596 = vmul.f32 1.0, %v595
        %v597 = vrcp.pop %v505
        %v598 = vmul.f32 %v505, %v597
        %v599 = vsub.f32 1.0, %v598
        %v600 = vmul.f32 %v597, %v599
        %v601 = vadd.f32 %v597, %v600
        %vm602 = vweird.f32 %v505
        %vm603 = vweird.f32 %v597
        %vm604 = vmor %vm602, %vm603
        %v605 = vsel %vm604, %v597, %v601
        %v606 = vand.u32 2147483647, %v505
        %vm607 = vcmp.eq.f32.partialorder %v606, 8.507059e+37
        %v608 = vand.u32 %v505, 2147483648
        %v609 = vor.u32 1.1754944e-38, %v608
        %v610 = vsel %vm607, %v609, %v605
        %v611 = vmul.f32 1.0, %v610
        %v612 = vrcp.pop %v506
        %v613 = vmul.f32 %v506, %v612
        %v614 = vsub.f32 1.0, %v613
        %v615 = vmul.f32 %v612, %v614
        %v616 = vadd.f32 %v612, %v615
        %vm617 = vweird.f32 %v506
        %vm618 = vweird.f32 %v612
        %vm619 = vmor %vm617, %vm618
        %v620 = vsel %vm619, %v612, %v616
        %v621 = vand.u32 2147483647, %v506
        %vm622 = vcmp.eq.f32.partialorder %v621, 8.507059e+37
        %v623 = vand.u32 %v506, 2147483648
        %v624 = vor.u32 1.1754944e-38, %v623
        %v625 = vsel %vm622, %v624, %v620
        %v626 = vmul.f32 1.0, %v625
        %v627 = vmul.f32 %v435, %v521
        %v628 = vmul.f32 %v464, %v536
        %v629 = vmul.f32 %v438, %v551
        %v630 = vmul.f32 %v467, %v566
        %v631 = vmul.f32 %v441, %v581
        %v632 = vmul.f32 %v470, %v596
        %v633 = vmul.f32 %v444, %v611
        %v634 = vmul.f32 %v473, %v626
        %v635 = vld [vmem:[%s4] sm:$0xf]
        %v636 = vld [vmem:[%s5] sm:$0xf]
        %638 = vset.pattern.permute.xlu0 0
        %639 = vperm.xlu0 %638, %v636
        %v640 = vpop.permute.xlu0 %639
        %vm642 = vcmask 261120
        %v644 = vsel %vm642, %v635, 0
        %646 = vmatpush.msra.mxu0 0.0
        %647 = vmatpush.msra.mxu0 0.0
        %648 = vmatpush.msra.mxu0 0.0
        %649 = vmatpush.msra.mxu0 0.0
        %650 = vmatpush.msra.mxu0 0.0
        %651 = vmatpush.msra.mxu0 0.0
        %652 = vmatpush.msra.mxu0 0.0
        %653 = vmatpush.msra.mxu0 0.0
        %654 = vmatpush.msra.mxu0 0.0
        %655 = vmatpush.msra.mxu0 0.0
        %656 = vmatpush.msra.mxu0 0.0
        %657 = vmatpush.msra.mxu0 0.0
        %658 = vmatpush.msra.mxu0 %v633
        %659 = vmatpush.msra.mxu0 %v631
        %660 = vmatpush.msra.mxu0 %v629
        %661 = vmatpush.msra.mxu0 %v627
        %662 = vmatmul.f32.gmra.mxu0 %v644
        %v663 = vpop.f32.mrf.mxu0
        %v664 = vadd.f32 %v640, %v663
        %665 = vdwg.mxu0
        %666 = vmatpush.msra.mxu0 0.0
        %667 = vmatpush.msra.mxu0 0.0
        %668 = vmatpush.msra.mxu0 0.0
        %669 = vmatpush.msra.mxu0 0.0
        %670 = vmatpush.msra.mxu0 0.0
        %671 = vmatpush.msra.mxu0 0.0
        %672 = vmatpush.msra.mxu0 0.0
        %673 = vmatpush.msra.mxu0 0.0
        %674 = vmatpush.msra.mxu0 0.0
        %675 = vmatpush.msra.mxu0 0.0
        %676 = vmatpush.msra.mxu0 0.0
        %677 = vmatpush.msra.mxu0 0.0
        %678 = vmatpush.msra.mxu0 %v634
        %679 = vmatpush.msra.mxu0 %v632
        %680 = vmatpush.msra.mxu0 %v630
        %681 = vmatpush.msra.mxu0 %v628
        %682 = vmatmul.f32.gmra.mxu0 %v644
        %v683 = vpop.f32.mrf.mxu0
        %v684 = vadd.f32 %v640, %v683
        %685 = vdwg.mxu0
        %686 = vst [vmem:[#allocation1] ss:$2 sm:$0xff] %v365
        %v687 = vld.sshfl [vmem:[#allocation1] sm:$0xff pattern:$0x75316420]
        %v688 = vld.sshfl [vmem:[#allocation1 + $0x8] sm:$0xff pattern:$0x75316420]
        %v691 = vsel %vm412, %v687, 0.0
        %v692 = vsel %vm412, %v688, 0.0
        %v693 = vadd.f32 %v691, %v692
        %694 = vadd.xlane.f32.xlu0 %v693
        %v695 = vpop.xlane.xlu0 %694
        %v696 = vrcp.pop 256.0
        %v697 = vmul.f32 256.0, %v696
        %v698 = vsub.f32 1.0, %v697
        %v699 = vmul.f32 %v696, %v698
        %v700 = vadd.f32 %v696, %v699
        %vm701 = vweird.f32 %v696
        %v702 = vsel %vm701, %v696, %v700
        %v703 = vmul.f32 %v695, %v702
        %v704 = vld [vmem:[%s6] sm:$0xf]
        %v705 = vmul.f32 %v703, %v704
        %vm706 = vcmask 257024
        %v707 = vsel %vm706, %v705, 0.0
        %v708 = vrot.slane %v707, 4
        %v709 = vadd.f32 %v707, %v708
        %v710 = vrot.slane %v709, 2
        %v711 = vadd.f32 %v709, %v710
        %v712 = vrot.slane %v711, 1
        %v713 = vadd.f32 %v711, %v712
        %v714 = vadd.f32 %v713, %v370
        %v715 = vxor.u32 %v714, 2147483648
        %v716 = vmul.f32 %v715, 1.442695
        %v717 = vpow.pop %v716
        %v718 = vadd.f32 %v717, 1.0
        %v719 = vrcp.pop %v718
        %v720 = vmul.f32 %v718, %v719
        %v721 = vsub.f32 1.0, %v720
        %v722 = vmul.f32 %v719, %v721
        %v723 = vadd.f32 %v719, %v722
        %vm724 = vweird.f32 %v718
        %vm725 = vweird.f32 %v719
        %vm726 = vmor %vm724, %vm725
        %v727 = vsel %vm726, %v719, %v723
        %v728 = vand.u32 2147483647, %v718
        %vm729 = vcmp.eq.f32.partialorder %v728, 8.507059e+37
        %v730 = vand.u32 %v718, 2147483648
        %v731 = vor.u32 1.1754944e-38, %v730
        %v732 = vsel %vm729, %v731, %v727
        %v733 = vmul.f32 1.0, %v732
        %v734 = vmul.f32 %v714, %v733
        %v735 = vld [vmem:[%s7] sm:$0xff]
        %v736 = vld [vmem:[%s7 + $0x8] sm:$0xff]
        %v737 = vld [vmem:[%s7 + $0x10] sm:$0xff]
        %v738 = vld [vmem:[%s7 + $0x18] sm:$0xff]
        %v739 = vld [vmem:[%s8] sm:$0x1]
        %v741 = vsel %vm642, %v734, 0
        %743 = vmatpush.msra.mxu0 0.0
        %744 = vmatpush.msra.mxu0 0.0
        %745 = vmatpush.msra.mxu0 0.0
        %746 = vmatpush.msra.mxu0 0.0
        %747 = vmatpush.msra.mxu0 0.0
        %748 = vmatpush.msra.mxu0 0.0
        %749 = vmatpush.msra.mxu0 0.0
        %750 = vmatpush.msra.mxu0 0.0
        %751 = vmatpush.msra.mxu0 0.0
        %752 = vmatpush.msra.mxu0 0.0
        %753 = vmatpush.msra.mxu0 0.0
        %754 = vmatpush.msra.mxu0 0.0
        %755 = vmatpush.msra.mxu0 %v738
        %756 = vmatpush.msra.mxu0 %v737
        %757 = vmatpush.msra.mxu0 %v736
        %758 = vmatpush.msra.mxu0 %v735
        %759 = vmatmul.f32.gmra.mxu0 %v741
        %v760 = vpop.f32.mrf.mxu0
        %v761 = vadd.f32 %v739, %v760
        %762 = vdwg.mxu0
        %vm763 = vcmask 40960
        %v764 = vsel %vm763, %v761, -inf
        %765 = vmax.xlane.f32.xlu0 %v764
        %v766 = vpop.xlane.xlu0 %765
        %v767 = vsub.f32 %v761, %v766
        %v768 = vmul.f32 %v767, 1.442695
        %v769 = vpow.pop %v768
        %v770 = vsel %vm763, %v769, 0.0
        %771 = vadd.xlane.f32.xlu0 %v770
        %v772 = vpop.xlane.xlu0 %771
        %v773 = vrcp.pop %v772
        %v774 = vmul.f32 %v769, %v773
        %v775 = vlaneseq
        %v776 = vand.u32 %v775, 127
        %vm777 = vcmp.eq.s32.totalorder %v776, 2
        %v778 = vsel %vm777, 1, 0
        %v779 = vcvt.s32.f32 %v778
        %v780 = vsub.f32 %v779, %v774
        %vm781 = vcmask 48128
        %v783 = vsel %vm781, %v780, 0
        %v786 = vsel %vm781, %v735, 0
        %v789 = vsel %vm781, %v736, 0
        %v792 = vsel %vm781, %v737, 0
        %v795 = vsel %vm781, %v738, 0
        %797 = vmatpush.xpose.msra.mxu0 0.0
        %798 = vmatpush.xpose.msra.mxu0 0.0
        %799 = vmatpush.xpose.msra.mxu0 0.0
        %800 = vmatpush.xpose.msra.mxu0 0.0
        %801 = vmatpush.xpose.msra.mxu0 0.0
        %802 = vmatpush.xpose.msra.mxu0 0.0
        %803 = vmatpush.xpose.msra.mxu0 0.0
        %804 = vmatpush.xpose.msra.mxu0 0.0
        %805 = vmatpush.xpose.msra.mxu0 0.0
        %806 = vmatpush.xpose.msra.mxu0 0.0
        %807 = vmatpush.xpose.msra.mxu0 0.0
        %808 = vmatpush.xpose.msra.mxu0 0.0
        %809 = vmatpush.xpose.msra.mxu0 %v795
        %810 = vmatpush.xpose.msra.mxu0 %v792
        %811 = vmatpush.xpose.msra.mxu0 %v789
        %812 = vmatpush.xpose.msra.mxu0 %v786
        %813 = vmatmul.f32.gmra.mxu0 %v783
        %v814 = vpop.f32.mrf.mxu0
        %v815 = vadd.f32 0.0, %v814
        %816 = vdwg.mxu0
        %v817 = vsub.f32 1.0, %v733
        %v818 = vmul.f32 %v714, %v817
        %v819 = vadd.f32 %v818, 1.0
        %v820 = vmul.f32 %v733, %v819
        %v821 = vmul.f32 %v815, %v820
        %v822 = vperm.slane %v821, 0
        %v823 = vmul.f32 %v704, %v822
        %v824 = vsel %vm706, %v823, 0.0
        %825 = vadd.xlane.f32.xlu0 %v824
        %v826 = vpop.xlane.xlu0 %825
        %v827 = vmul.f32 %v826, 0.005859375
        %v828 = vadd.f32 %v664, %v827
        %v829 = vadd.f32 %v684, %v827
        %v832 = vrot.slane %v829, 4
        %v833 = vsel %vm412, %v828, %v832
        %835 = vst [vmem:[%s351] sm:$0xff] %v833
        %s836 = sand.u32 %s235, 1
        %s837 = scalar_lea.sflag [#allocation3], %s836
        %s838 = sand.u32 %s235, 1
        %s839 = smul.addr %s838, 8
        %s840 = scalar_lea.vmem [#allocation2], %s839
        // Predicated region
        $region57: #{tpu_custom_call.1} parent=55 // pred_check
          %p841 = pneg %p245
        $region58: #{tpu_custom_call.1} parent=55 // pred_check_branch
          %843 = sbr.rel (%p841) target = $region60
        $region59: #{tpu_custom_call.1} parent=55 // pred_region
          %845 = vsyncadd %s837, 0
          %s846 = smul.addr %s23, 2
          %s847 = smul.addr %s846, 4
          %s848 = scalar_lea.hbm %s9, %s847
          %s850 = sshll.u32 %s840, 4
          %s851 = int_to_ptr.vmem [resolvable:$true] %s850
          %s852 = sshll.u32 %s848, 4
          %s853 = int_to_ptr.hbm [resolvable:$true] %s852
          %855 = dma.vmem_to_hbm [thread:$0]  %s851, 128, %s853, %s837
        $region60: #{tpu_custom_call.1} parent=55 // pred_fallthru
          _
      $region56: #{tpu_custom_call.1} parent=5 // pred_fallthru
        _
      %p856 = scmp.le.s32.totalorder 2, %s18
      // Predicated region
      $region61: #{tpu_custom_call.1} parent=5 // pred_check
        %p857 = pneg %p856
      $region62: #{tpu_custom_call.1} parent=5 // pred_check_branch
        %859 = sbr.rel (%p857) target = $region64
      $region63: #{tpu_custom_call.1} parent=5 // pred_region
        %s860 = ssub.s32 %s18, 2
        // Predicated region
        $region65: #{tpu_custom_call.1} parent=63 // pred_check
          %p861 = pneg %p251
        $region66: #{tpu_custom_call.1} parent=63 // pred_check_branch
          %863 = sbr.rel (%p861) target = $region68
        $region67: #{tpu_custom_call.1} parent=63 // pred_region
          %s864 = sand.u32 %s236, 1
          %s865 = scalar_lea.sflag [#allocation3], %s864
          %s866 = sand.u32 %s236, 1
          %s867 = smul.addr %s866, 8
          %s868 = scalar_lea.vmem [#allocation2], %s867
          %870 = dma.done %s865, 128
        $region68: #{tpu_custom_call.1} parent=63 // pred_fallthru
          _
      $region64: #{tpu_custom_call.1} parent=5 // pred_fallthru
        _
    $region6: #{tpu_custom_call.1} parent=1 // loop_footer
      %s22 = sadd.s32 1, %s18
    $region7: #{tpu_custom_call.1} parent=1 // loop_footer_branch
      %17 = sbr.rel target = $region3
    $region8: #{tpu_custom_call.1} parent=1 // loop_exit
      _
    %871 = vsyncpa [#allocation3], 1
    %s872 = scalar_lea.sflag [#allocation3], 1
    %873 = vsyncpa %s872, 1

</llo_original>
